<compile_context>
chip_gen: v5e
topology: v5e:2x2
jax: 0.10.0
libtpu: 0.0.40
codegen_flags: <defaults>
</compile_context>

<pallas_src>
import functools
import math

import numpy as np

import jax
import jax.numpy as jnp
from jax.experimental import pallas as pl
from jax.experimental.pallas import tpu as pltpu


def _flip_parity_kernel(pos_ref, x_ref, out_ref, *, num_steps):
    # pos_ref : (tn, T)  int32  target coordinate per step (lane-dense)
    # x_ref   : (tn, td) int8   initial binary samples (0/1), lane-padded block
    # out_ref : (tn, td) int8   final samples block
    tn, td = x_ref.shape
    col0 = pl.program_id(1) * td                                  # global column offset
    col_ids = col0 + jax.lax.broadcasted_iota(jnp.int32, (tn, td), 1)

    pos = pos_ref[...]                                            # (tn, T) int32
    parity = jnp.zeros((tn, td), jnp.int32)
    # Static (unrolled) step loop: one compare + one XOR per vreg per step,
    # no cross-lane work.  TODO(synk): for very large num_steps switch to a
    # chunked lax.fori_loop to bound code size.
    for t in range(num_steps):
        parity = parity ^ (pos[:, t:t + 1] == col_ids).astype(jnp.int32)

    x = x_ref[...].astype(jnp.int32)
    out_ref[...] = (x ^ parity).astype(jnp.int8)                  # single vxor + pack


def _round_up(x, m):
    return ((x + m - 1) // m) * m


def _choose_tiles(n, d_pad, num_steps):
    # Lane tile over coordinates: largest of {1024,512,256,128} dividing d_pad,
    # bounding the in-kernel parity accumulator to a few hundred KiB.
    td = 128
    for cand in (1024, 512, 256, 128):
        if d_pad % cand == 0:
            td = cand
            break
    # Row tile: fit double-buffered int8 in/out tiles + int32 pos tiles in a
    # ~16 MiB working set (comfortable within v7x's 64 MiB physical VMEM and
    # v5e/v6e's 128 MiB), capped at 1024 rows so large problems get >= 2 grid
    # steps for megacore / v7x 2-TC sharding.  int8 tiles need rows % 32 == 0.
    budget = 16 * 1024 * 1024
    per_row = 4 * td + 8 * num_steps          # 2x(in+out) int8 + 2x pos int32
    tn = max(32, min(1024, (budget // per_row) // 32 * 32))
    tn = min(tn, _round_up(n, 32))
    return tn, td


def uniform_binary_sampler(num_steps, discrete_dim, *, with_replacement, key,
                           num_samples=None, init_samples=None):
    """Pallas equivalent of UniformBinarySampler.forward.

    Returns (samples (N, D) int32, delta: list of num_steps (N, 1) int32 arrays,
             total_log (N, 1) float32).
    """
    assert num_samples is not None or init_samples is not None
    k_init, k_pos = jax.random.split(key)

    base_log = 0.0
    if init_samples is None:
        init_samples = jax.random.randint(
            k_init, (num_samples, discrete_dim), 0, 2, dtype=jnp.int32)
        base_log = -math.log(2.0) * discrete_dim
    else:
        init_samples = jnp.asarray(init_samples, dtype=jnp.int32)
        num_samples = init_samples.shape[0]

    if with_replacement:
        target_pos = jax.random.randint(
            k_pos, (num_samples, num_steps), 0, discrete_dim, dtype=jnp.int32)
        step_log = -float(num_steps) * math.log(discrete_dim)
    else:
        assert num_steps <= discrete_dim
        perms = jax.vmap(lambda k: jax.random.permutation(k, discrete_dim))(
            jax.random.split(k_pos, num_samples))
        target_pos = perms[:, :num_steps].astype(jnp.int32)
        step_log = -sum(math.log(discrete_dim - i) for i in range(num_steps))

    # The log proposal probability is a compile-time constant -> no kernel output.
    total_log_const = float(base_log + step_log)

    n, d = num_samples, discrete_dim
    d_pad = _round_up(d, 128)                 # lane-dense compute / output slab
    tn, td = _choose_tiles(n, d_pad, num_steps)
    n_pad = _round_up(n, tn)

    # int8 sample storage: 4x less HBM traffic than int32 (largest win on v5e).
    x_pad = jnp.pad(init_samples.astype(jnp.int8),
                    ((0, n_pad - n), (0, d_pad - d)))
    pos_pad = jnp.pad(target_pos, ((0, n_pad - n), (0, 0)))

    kernel = functools.partial(_flip_parity_kernel, num_steps=num_steps)

    cost = pl.CostEstimate(
        flops=int(2 * n_pad * d_pad * num_steps),                 # cmp + xor per elem per step
        transcendentals=0,
        bytes_accessed=int(2 * n_pad * d_pad                      # int8 in + out
                           + 4 * n_pad * num_steps * (d_pad // td)),  # pos re-reads
    )

    samples_pad = pl.pallas_call(
        kernel,
        grid=(n_pad // tn, d_pad // td),
        in_specs=[
            pl.BlockSpec((tn, num_steps), lambda i, j: (i, 0)),   # positions (lane-dense)
            pl.BlockSpec((tn, td), lambda i, j: (i, j)),          # init samples block
        ],
        out_specs=pl.BlockSpec((tn, td), lambda i, j: (i, j)),    # final samples block
        out_shape=jax.ShapeDtypeStruct((n_pad, d_pad), jnp.int8),
        input_output_aliases={1: 0},      # donate padded init buffer -> samples output
        compiler_params=pltpu.CompilerParams(
            dimension_semantics=("parallel", "parallel"),
            vmem_limit_bytes=48 * 1024 * 1024,
        ),
        cost_estimate=cost,
    )(pos_pad, x_pad)

    samples = samples_pad[:n, :d].astype(jnp.int32)
    total_log = jnp.full((n, 1), total_log_const, dtype=jnp.float32)
    delta = [target_pos[:, i:i + 1] for i in range(num_steps)]
    return samples, delta, total_log


def _reference_forward(init_np, pos_np, discrete_dim, with_replacement, random_init):
    # Pure-numpy transliteration of UniformBinarySampler.forward's loop.
    x = init_np.copy()
    n, t = pos_np.shape
    total_log = np.zeros((n, 1), dtype=np.float64)
    if random_init:
        total_log -= np.log(2.0) * discrete_dim
    rows = np.arange(n)
    for i in range(t):
        p = pos_np[:, i]
        total_log += -np.log(discrete_dim) if with_replacement else -np.log(discrete_dim - i)
        x[rows, p] = 1 - x[rows, p]
    return x, total_log


if __name__ == "__main__":
    discrete_dim = 16
    num_samples = 16
    num_steps = 12

    key = jax.random.PRNGKey(0)
    k1, k2, k3 = jax.random.split(key, 3)

    # --- Run 1: init_samples provided, with replacement (exact reference check). ---
    init_samples = jax.random.randint(
        k1, (num_samples, discrete_dim), 0, 2, dtype=jnp.int32)
    samples, delta, total_log = uniform_binary_sampler(
        num_steps, discrete_dim, with_replacement=True, key=k2,
        init_samples=init_samples)
    samples = jax.block_until_ready(samples)

    pos_np = np.asarray(jnp.concatenate(delta, axis=1))
    ref_x, ref_log = _reference_forward(
        np.asarray(init_samples), pos_np, discrete_dim,
        with_replacement=True, random_init=False)
    assert samples.shape == (num_samples, discrete_dim)
    assert np.array_equal(np.asarray(samples), ref_x)
    assert np.allclose(np.asarray(total_log), ref_log, atol=1e-4)

    # --- Run 2: random init (init_samples=None), without replacement. ---
    samples2, delta2, total_log2 = uniform_binary_sampler(
        num_steps, discrete_dim, with_replacement=False, key=k3,
        num_samples=num_samples)
    samples2 = jax.block_until_ready(samples2)

    assert samples2.shape == (num_samples, discrete_dim)
    assert bool(jnp.all((samples2 == 0) | (samples2 == 1)))
    expected_log = -np.log(2.0) * discrete_dim - sum(
        np.log(discrete_dim - i) for i in range(num_steps))
    assert np.allclose(np.asarray(total_log2), expected_log, atol=1e-4)
    assert len(delta2) == num_steps
    pos2_np = np.asarray(jnp.concatenate(delta2, axis=1))
    # Without replacement: each row's chosen positions must be distinct.
    assert all(len(set(pos2_np[r].tolist())) == num_steps for r in range(num_samples))

    print("KERNEL_OK")
</pallas_src>

<mosaic_0001>
module attributes {stable_mosaic.version = 11 : i64} {
  func.func @_flip_parity_kernel(%arg0: i32, %arg1: i32, %arg2: memref<32x12xi32, #tpu.memory_space<vmem>>, %arg3: memref<32x128xi8, #tpu.memory_space<vmem>>, %arg4: memref<32x128xi8, #tpu.memory_space<vmem>>) attributes {dimension_semantics = [#tpu.dimension_semantics<parallel>, #tpu.dimension_semantics<parallel>], iteration_bounds = array<i64: 1, 1>, scalar_prefetch = 0 : i64, scratch_operands = 0 : i64, tpu.core_type = #tpu.core_type<tc>, window_params = [{transform_indices = @transform_0, window_bounds = array<i64: 32, 12>}, {transform_indices = @transform_1, window_bounds = array<i64: 32, 128>}, {transform_indices = @transform_2, window_bounds = array<i64: 32, 128>}]} {
    %c128_i32 = arith.constant 128 : i32
    %0 = arith.muli %arg1, %c128_i32 : i32
    %1 = tpu.iota {dimensions = array<i32: 1>} : vector<32x128xi32>
    %2 = vector.broadcast %0 : i32 to vector<32x128xi32>
    %3 = arith.addi %2, %1 : vector<32x128xi32>
    %c0 = arith.constant 0 : index
    %c0_0 = arith.constant 0 : index
    %4 = vector.load %arg2[%c0, %c0_0] : memref<32x12xi32, #tpu.memory_space<vmem>>, vector<32x12xi32>
    %c0_i32 = arith.constant 0 : i32
    %5 = vector.broadcast %c0_i32 : i32 to vector<32x128xi32>
    %6 = vector.extract_strided_slice %4 {offsets = [0, 0], sizes = [32, 1], strides = [1, 1]} : vector<32x12xi32> to vector<32x1xi32>
    %7 = vector.broadcast %6 : vector<32x1xi32> to vector<32x128xi32>
    %8 = arith.cmpi eq, %7, %3 : vector<32x128xi32>
    %9 = arith.extui %8 : vector<32x128xi1> to vector<32x128xi32>
    %10 = arith.xori %5, %9 : vector<32x128xi32>
    %11 = vector.extract_strided_slice %4 {offsets = [0, 1], sizes = [32, 1], strides = [1, 1]} : vector<32x12xi32> to vector<32x1xi32>
    %12 = vector.broadcast %11 : vector<32x1xi32> to vector<32x128xi32>
    %13 = arith.cmpi eq, %12, %3 : vector<32x128xi32>
    %14 = arith.extui %13 : vector<32x128xi1> to vector<32x128xi32>
    %15 = arith.xori %10, %14 : vector<32x128xi32>
    %16 = vector.extract_strided_slice %4 {offsets = [0, 2], sizes = [32, 1], strides = [1, 1]} : vector<32x12xi32> to vector<32x1xi32>
    %17 = vector.broadcast %16 : vector<32x1xi32> to vector<32x128xi32>
    %18 = arith.cmpi eq, %17, %3 : vector<32x128xi32>
    %19 = arith.extui %18 : vector<32x128xi1> to vector<32x128xi32>
    %20 = arith.xori %15, %19 : vector<32x128xi32>
    %21 = vector.extract_strided_slice %4 {offsets = [0, 3], sizes = [32, 1], strides = [1, 1]} : vector<32x12xi32> to vector<32x1xi32>
    %22 = vector.broadcast %21 : vector<32x1xi32> to vector<32x128xi32>
    %23 = arith.cmpi eq, %22, %3 : vector<32x128xi32>
    %24 = arith.extui %23 : vector<32x128xi1> to vector<32x128xi32>
    %25 = arith.xori %20, %24 : vector<32x128xi32>
    %26 = vector.extract_strided_slice %4 {offsets = [0, 4], sizes = [32, 1], strides = [1, 1]} : vector<32x12xi32> to vector<32x1xi32>
    %27 = vector.broadcast %26 : vector<32x1xi32> to vector<32x128xi32>
    %28 = arith.cmpi eq, %27, %3 : vector<32x128xi32>
    %29 = arith.extui %28 : vector<32x128xi1> to vector<32x128xi32>
    %30 = arith.xori %25, %29 : vector<32x128xi32>
    %31 = vector.extract_strided_slice %4 {offsets = [0, 5], sizes = [32, 1], strides = [1, 1]} : vector<32x12xi32> to vector<32x1xi32>
    %32 = vector.broadcast %31 : vector<32x1xi32> to vector<32x128xi32>
    %33 = arith.cmpi eq, %32, %3 : vector<32x128xi32>
    %34 = arith.extui %33 : vector<32x128xi1> to vector<32x128xi32>
    %35 = arith.xori %30, %34 : vector<32x128xi32>
    %36 = vector.extract_strided_slice %4 {offsets = [0, 6], sizes = [32, 1], strides = [1, 1]} : vector<32x12xi32> to vector<32x1xi32>
    %37 = vector.broadcast %36 : vector<32x1xi32> to vector<32x128xi32>
    %38 = arith.cmpi eq, %37, %3 : vector<32x128xi32>
    %39 = arith.extui %38 : vector<32x128xi1> to vector<32x128xi32>
    %40 = arith.xori %35, %39 : vector<32x128xi32>
    %41 = vector.extract_strided_slice %4 {offsets = [0, 7], sizes = [32, 1], strides = [1, 1]} : vector<32x12xi32> to vector<32x1xi32>
    %42 = vector.broadcast %41 : vector<32x1xi32> to vector<32x128xi32>
    %43 = arith.cmpi eq, %42, %3 : vector<32x128xi32>
    %44 = arith.extui %43 : vector<32x128xi1> to vector<32x128xi32>
    %45 = arith.xori %40, %44 : vector<32x128xi32>
    %46 = vector.extract_strided_slice %4 {offsets = [0, 8], sizes = [32, 1], strides = [1, 1]} : vector<32x12xi32> to vector<32x1xi32>
    %47 = vector.broadcast %46 : vector<32x1xi32> to vector<32x128xi32>
    %48 = arith.cmpi eq, %47, %3 : vector<32x128xi32>
    %49 = arith.extui %48 : vector<32x128xi1> to vector<32x128xi32>
    %50 = arith.xori %45, %49 : vector<32x128xi32>
    %51 = vector.extract_strided_slice %4 {offsets = [0, 9], sizes = [32, 1], strides = [1, 1]} : vector<32x12xi32> to vector<32x1xi32>
    %52 = vector.broadcast %51 : vector<32x1xi32> to vector<32x128xi32>
    %53 = arith.cmpi eq, %52, %3 : vector<32x128xi32>
    %54 = arith.extui %53 : vector<32x128xi1> to vector<32x128xi32>
    %55 = arith.xori %50, %54 : vector<32x128xi32>
    %56 = vector.extract_strided_slice %4 {offsets = [0, 10], sizes = [32, 1], strides = [1, 1]} : vector<32x12xi32> to vector<32x1xi32>
    %57 = vector.broadcast %56 : vector<32x1xi32> to vector<32x128xi32>
    %58 = arith.cmpi eq, %57, %3 : vector<32x128xi32>
    %59 = arith.extui %58 : vector<32x128xi1> to vector<32x128xi32>
    %60 = arith.xori %55, %59 : vector<32x128xi32>
    %61 = vector.extract_strided_slice %4 {offsets = [0, 11], sizes = [32, 1], strides = [1, 1]} : vector<32x12xi32> to vector<32x1xi32>
    %62 = vector.broadcast %61 : vector<32x1xi32> to vector<32x128xi32>
    %63 = arith.cmpi eq, %62, %3 : vector<32x128xi32>
    %64 = arith.extui %63 : vector<32x128xi1> to vector<32x128xi32>
    %65 = arith.xori %60, %64 : vector<32x128xi32>
    %c0_1 = arith.constant 0 : index
    %c0_2 = arith.constant 0 : index
    %66 = vector.load %arg3[%c0_1, %c0_2] : memref<32x128xi8, #tpu.memory_space<vmem>>, vector<32x128xi8>
    %67 = arith.extsi %66 : vector<32x128xi8> to vector<32x128xi32>
    %68 = arith.xori %67, %65 : vector<32x128xi32>
    %69 = arith.trunci %68 : vector<32x128xi32> to vector<32x128xi8>
    %c0_3 = arith.constant 0 : index
    %c0_4 = arith.constant 0 : index
    %70 = vector.load %arg4[%c0_3, %c0_4] : memref<32x128xi8, #tpu.memory_space<vmem>>, vector<32x128xi8>
    tpu.vector_store %arg4[%c0_3, %c0_4], %69 {strides = array<i32>} : memref<32x128xi8, #tpu.memory_space<vmem>>, vector<32x128xi8>,
    return
  }
  func.func @transform_0(%arg0: i32, %arg1: i32) -> (i32, i32) {
    %c0_i32 = arith.constant 0 : i32
    %c0_i32_0 = arith.constant 0 : i32
    return %arg0, %c0_i32 : i32, i32
  }
  func.func @transform_1(%arg0: i32, %arg1: i32) -> (i32, i32) {
    %c0_i32 = arith.constant 0 : i32
    return %arg0, %arg1 : i32, i32
  }
  func.func @transform_2(%arg0: i32, %arg1: i32) -> (i32, i32) {
    %c0_i32 = arith.constant 0 : i32
    return %arg0, %arg1 : i32, i32
  }
}

</mosaic_0001>

<llo_original>
// kernel: tpu_custom_call.1
$region0: #{tpu_custom_call.1}
  #allocation0 [shape = 'u32[]', space=smem, size = 0x4, offset = 0x4, fixed_abs, tag = 'smem constant byte address 0x4 - core index']
  #allocation1 [shape = 'u32[72,128]{1,0:T(1,128)}', space=vmem, size = 0x9000, scoped, tag = 'internal scratch']
  %s0 = inlined_call_operand.vmem [shape: s32[32,12], index: 0, kind: input, shape index: {}]
  %s1 = inlined_call_operand.hbm [shape: s8[32,128], index: 1, kind: input, shape index: {}, may-alias: {1,2}]
  %s2 = inlined_call_operand.hbm [shape: s8[32,128], index: 2, kind: output, shape index: {}, may-alias: {1,2}]
  %s3 = sld [smem:[#allocation0]]
  $region22: #{tpu_custom_call.1} parent=0
    _
  %s5 = ssub.s32 1, %s3
  %s6 = scalar_select 0, %s5, %s3
  $region1: #{tpu_custom_call.1} parent=0
    #allocation2 [shape = 'u8[4096]{0}', space=vmem, size = 0x1000, scoped, tag = 'input window, operand 1, single buffered']
    #allocation3 [shape = 's32[1]{0}', space=sflag, size = 0x4, scoped, tag = 'scoped memory for tpu_custom_call.1']
    #allocation4 [shape = 's32[1]{0}', space=sflag, size = 0x4, scoped, tag = 'scoped memory for tpu_custom_call.1']
    #allocation5 [shape = 'u8[4096]{0}', space=vmem, size = 0x1000, scoped, tag = 'output window, operand 0, single buffered']
    %7 = vsyncpa [#allocation3], 0
    %8 = vsyncpa [#allocation4], 0
    // Predicated region
    $region2: #{tpu_custom_call.1} parent=1 // pred_check
      _
    $region3: #{tpu_custom_call.1} parent=1 // pred_check_branch
      %10 = sbr.rel (0) target = $region5
    $region4: #{tpu_custom_call.1} parent=1 // pred_region
      _
    $region5: #{tpu_custom_call.1} parent=1 // pred_fallthru
      _
    // Predicated region
    $region6: #{tpu_custom_call.1} parent=1 // pred_check
      _
    $region7: #{tpu_custom_call.1} parent=1 // pred_check_branch
      %12 = sbr.rel (0) target = $region9
    $region8: #{tpu_custom_call.1} parent=1 // pred_region
      %14 = vsyncadd [#allocation3], 0
      %s16 = sshll.u32 %s1, 4
      %s17 = int_to_ptr.hbm [resolvable:$true] %s16
      %s18 = sshll.u32 [#allocation2], 4
      %s19 = int_to_ptr.vmem [resolvable:$true] %s18
      %21 = dma.hbm_to_vmem [thread:$0]  %s17, 128, %s19, [#allocation3]
    $region9: #{tpu_custom_call.1} parent=1 // pred_fallthru
      _
    // Predicated region
    $region10: #{tpu_custom_call.1} parent=1 // pred_check
      _
    $region11: #{tpu_custom_call.1} parent=1 // pred_check_branch
      %23 = sbr.rel (0) target = $region13
    $region12: #{tpu_custom_call.1} parent=1 // pred_region
      %25 = dma.done [#allocation3], 128
    $region13: #{tpu_custom_call.1} parent=1 // pred_fallthru
      _
    %s26 = smul.u32 0, 128
    %v27 = vlaneseq
    %v28 = vand.u32 %v27, 127
    %v29 = vstv %s26
    %v30 = vadd.s32 %v29, %v28
    %v31 = vld [vmem:[%s0] sm:$0xff]
    %v32 = vld [vmem:[%s0 + $0x8] sm:$0xff]
    %v33 = vld [vmem:[%s0 + $0x10] sm:$0xff]
    %v34 = vld [vmem:[%s0 + $0x18] sm:$0xff]
    %35 = vset.pattern.permute.xlu0 0
    %36 = vperm.xlu0 %35, %v31
    %v37 = vpop.permute.xlu0 %36
    %38 = vset.pattern.permute.xlu0 0
    %39 = vperm.xlu0 %38, %v32
    %v40 = vpop.permute.xlu0 %39
    %41 = vset.pattern.permute.xlu0 0
    %42 = vperm.xlu0 %41, %v33
    %v43 = vpop.permute.xlu0 %42
    %44 = vset.pattern.permute.xlu0 0
    %45 = vperm.xlu0 %44, %v34
    %v46 = vpop.permute.xlu0 %45
    %vm47 = vcmp.eq.s32.totalorder %v37, %v30
    %vm48 = vcmp.eq.s32.totalorder %v40, %v30
    %vm49 = vcmp.eq.s32.totalorder %v43, %v30
    %vm50 = vcmp.eq.s32.totalorder %v46, %v30
    %51 = vset.pattern.permute.xlu0 1
    %52 = vperm.xlu0 %51, %v31
    %v53 = vpop.permute.xlu0 %52
    %54 = vset.pattern.permute.xlu0 1
    %55 = vperm.xlu0 %54, %v32
    %v56 = vpop.permute.xlu0 %55
    %57 = vset.pattern.permute.xlu0 1
    %58 = vperm.xlu0 %57, %v33
    %v59 = vpop.permute.xlu0 %58
    %60 = vset.pattern.permute.xlu0 1
    %61 = vperm.xlu0 %60, %v34
    %v62 = vpop.permute.xlu0 %61
    %vm63 = vcmp.eq.s32.totalorder %v53, %v30
    %vm64 = vcmp.eq.s32.totalorder %v56, %v30
    %vm65 = vcmp.eq.s32.totalorder %v59, %v30
    %vm66 = vcmp.eq.s32.totalorder %v62, %v30
    %vm67 = vmxor %vm47, %vm63
    %vm68 = vmxor %vm48, %vm64
    %vm69 = vmxor %vm49, %vm65
    %vm70 = vmxor %vm50, %vm66
    %71 = vset.pattern.permute.xlu0 2
    %72 = vperm.xlu0 %71, %v31
    %v73 = vpop.permute.xlu0 %72
    %74 = vset.pattern.permute.xlu0 2
    %75 = vperm.xlu0 %74, %v32
    %v76 = vpop.permute.xlu0 %75
    %77 = vset.pattern.permute.xlu0 2
    %78 = vperm.xlu0 %77, %v33
    %v79 = vpop.permute.xlu0 %78
    %80 = vset.pattern.permute.xlu0 2
    %81 = vperm.xlu0 %80, %v34
    %v82 = vpop.permute.xlu0 %81
    %vm83 = vcmp.eq.s32.totalorder %v73, %v30
    %vm84 = vcmp.eq.s32.totalorder %v76, %v30
    %vm85 = vcmp.eq.s32.totalorder %v79, %v30
    %vm86 = vcmp.eq.s32.totalorder %v82, %v30
    %vm87 = vmxor %vm67, %vm83
    %vm88 = vmxor %vm68, %vm84
    %vm89 = vmxor %vm69, %vm85
    %vm90 = vmxor %vm70, %vm86
    %91 = vset.pattern.permute.xlu0 3
    %92 = vperm.xlu0 %91, %v31
    %v93 = vpop.permute.xlu0 %92
    %94 = vset.pattern.permute.xlu0 3
    %95 = vperm.xlu0 %94, %v32
    %v96 = vpop.permute.xlu0 %95
    %97 = vset.pattern.permute.xlu0 3
    %98 = vperm.xlu0 %97, %v33
    %v99 = vpop.permute.xlu0 %98
    %100 = vset.pattern.permute.xlu0 3
    %101 = vperm.xlu0 %100, %v34
    %v102 = vpop.permute.xlu0 %101
    %vm103 = vcmp.eq.s32.totalorder %v93, %v30
    %vm104 = vcmp.eq.s32.totalorder %v96, %v30
    %vm105 = vcmp.eq.s32.totalorder %v99, %v30
    %vm106 = vcmp.eq.s32.totalorder %v102, %v30
    %vm107 = vmxor %vm87, %vm103
    %vm108 = vmxor %vm88, %vm104
    %vm109 = vmxor %vm89, %vm105
    %vm110 = vmxor %vm90, %vm106
    %111 = vset.pattern.permute.xlu0 4
    %112 = vperm.xlu0 %111, %v31
    %v113 = vpop.permute.xlu0 %112
    %114 = vset.pattern.permute.xlu0 4
    %115 = vperm.xlu0 %114, %v32
    %v116 = vpop.permute.xlu0 %115
    %117 = vset.pattern.permute.xlu0 4
    %118 = vperm.xlu0 %117, %v33
    %v119 = vpop.permute.xlu0 %118
    %120 = vset.pattern.permute.xlu0 4
    %121 = vperm.xlu0 %120, %v34
    %v122 = vpop.permute.xlu0 %121
    %vm123 = vcmp.eq.s32.totalorder %v113, %v30
    %vm124 = vcmp.eq.s32.totalorder %v116, %v30
    %vm125 = vcmp.eq.s32.totalorder %v119, %v30
    %vm126 = vcmp.eq.s32.totalorder %v122, %v30
    %vm127 = vmxor %vm107, %vm123
    %vm128 = vmxor %vm108, %vm124
    %vm129 = vmxor %vm109, %vm125
    %vm130 = vmxor %vm110, %vm126
    %131 = vset.pattern.permute.xlu0 5
    %132 = vperm.xlu0 %131, %v31
    %v133 = vpop.permute.xlu0 %132
    %134 = vset.pattern.permute.xlu0 5
    %135 = vperm.xlu0 %134, %v32
    %v136 = vpop.permute.xlu0 %135
    %137 = vset.pattern.permute.xlu0 5
    %138 = vperm.xlu0 %137, %v33
    %v139 = vpop.permute.xlu0 %138
    %140 = vset.pattern.permute.xlu0 5
    %141 = vperm.xlu0 %140, %v34
    %v142 = vpop.permute.xlu0 %141
    %vm143 = vcmp.eq.s32.totalorder %v133, %v30
    %vm144 = vcmp.eq.s32.totalorder %v136, %v30
    %vm145 = vcmp.eq.s32.totalorder %v139, %v30
    %vm146 = vcmp.eq.s32.totalorder %v142, %v30
    %vm147 = vmxor %vm127, %vm143
    %vm148 = vmxor %vm128, %vm144
    %vm149 = vmxor %vm129, %vm145
    %vm150 = vmxor %vm130, %vm146
    %151 = vset.pattern.permute.xlu0 6
    %152 = vperm.xlu0 %151, %v31
    %v153 = vpop.permute.xlu0 %152
    %154 = vset.pattern.permute.xlu0 6
    %155 = vperm.xlu0 %154, %v32
    %v156 = vpop.permute.xlu0 %155
    %157 = vset.pattern.permute.xlu0 6
    %158 = vperm.xlu0 %157, %v33
    %v159 = vpop.permute.xlu0 %158
    %160 = vset.pattern.permute.xlu0 6
    %161 = vperm.xlu0 %160, %v34
    %v162 = vpop.permute.xlu0 %161
    %vm163 = vcmp.eq.s32.totalorder %v153, %v30
    %vm164 = vcmp.eq.s32.totalorder %v156, %v30
    %vm165 = vcmp.eq.s32.totalorder %v159, %v30
    %vm166 = vcmp.eq.s32.totalorder %v162, %v30
    %vm167 = vmxor %vm147, %vm163
    %vm168 = vmxor %vm148, %vm164
    %vm169 = vmxor %vm149, %vm165
    %vm170 = vmxor %vm150, %vm166
    %171 = vset.pattern.permute.xlu0 7
    %172 = vperm.xlu0 %171, %v31
    %v173 = vpop.permute.xlu0 %172
    %174 = vset.pattern.permute.xlu0 7
    %175 = vperm.xlu0 %174, %v32
    %v176 = vpop.permute.xlu0 %175
    %177 = vset.pattern.permute.xlu0 7
    %178 = vperm.xlu0 %177, %v33
    %v179 = vpop.permute.xlu0 %178
    %180 = vset.pattern.permute.xlu0 7
    %181 = vperm.xlu0 %180, %v34
    %v182 = vpop.permute.xlu0 %181
    %vm183 = vcmp.eq.s32.totalorder %v173, %v30
    %vm184 = vcmp.eq.s32.totalorder %v176, %v30
    %vm185 = vcmp.eq.s32.totalorder %v179, %v30
    %vm186 = vcmp.eq.s32.totalorder %v182, %v30
    %vm187 = vmxor %vm167, %vm183
    %vm188 = vmxor %vm168, %vm184
    %vm189 = vmxor %vm169, %vm185
    %vm190 = vmxor %vm170, %vm186
    %191 = vset.pattern.permute.xlu0 8
    %192 = vperm.xlu0 %191, %v31
    %v193 = vpop.permute.xlu0 %192
    %194 = vset.pattern.permute.xlu0 8
    %195 = vperm.xlu0 %194, %v32
    %v196 = vpop.permute.xlu0 %195
    %197 = vset.pattern.permute.xlu0 8
    %198 = vperm.xlu0 %197, %v33
    %v199 = vpop.permute.xlu0 %198
    %200 = vset.pattern.permute.xlu0 8
    %201 = vperm.xlu0 %200, %v34
    %v202 = vpop.permute.xlu0 %201
    %vm203 = vcmp.eq.s32.totalorder %v193, %v30
    %vm204 = vcmp.eq.s32.totalorder %v196, %v30
    %vm205 = vcmp.eq.s32.totalorder %v199, %v30
    %vm206 = vcmp.eq.s32.totalorder %v202, %v30
    %vm207 = vmxor %vm187, %vm203
    %vm208 = vmxor %vm188, %vm204
    %vm209 = vmxor %vm189, %vm205
    %vm210 = vmxor %vm190, %vm206
    %211 = vset.pattern.permute.xlu0 9
    %212 = vperm.xlu0 %211, %v31
    %v213 = vpop.permute.xlu0 %212
    %214 = vset.pattern.permute.xlu0 9
    %215 = vperm.xlu0 %214, %v32
    %v216 = vpop.permute.xlu0 %215
    %217 = vset.pattern.permute.xlu0 9
    %218 = vperm.xlu0 %217, %v33
    %v219 = vpop.permute.xlu0 %218
    %220 = vset.pattern.permute.xlu0 9
    %221 = vperm.xlu0 %220, %v34
    %v222 = vpop.permute.xlu0 %221
    %vm223 = vcmp.eq.s32.totalorder %v213, %v30
    %vm224 = vcmp.eq.s32.totalorder %v216, %v30
    %vm225 = vcmp.eq.s32.totalorder %v219, %v30
    %vm226 = vcmp.eq.s32.totalorder %v222, %v30
    %vm227 = vmxor %vm207, %vm223
    %vm228 = vmxor %vm208, %vm224
    %vm229 = vmxor %vm209, %vm225
    %vm230 = vmxor %vm210, %vm226
    %231 = vset.pattern.permute.xlu0 10
    %232 = vperm.xlu0 %231, %v31
    %v233 = vpop.permute.xlu0 %232
    %234 = vset.pattern.permute.xlu0 10
    %235 = vperm.xlu0 %234, %v32
    %v236 = vpop.permute.xlu0 %235
    %237 = vset.pattern.permute.xlu0 10
    %238 = vperm.xlu0 %237, %v33
    %v239 = vpop.permute.xlu0 %238
    %240 = vset.pattern.permute.xlu0 10
    %241 = vperm.xlu0 %240, %v34
    %v242 = vpop.permute.xlu0 %241
    %vm243 = vcmp.eq.s32.totalorder %v233, %v30
    %vm244 = vcmp.eq.s32.totalorder %v236, %v30
    %vm245 = vcmp.eq.s32.totalorder %v239, %v30
    %vm246 = vcmp.eq.s32.totalorder %v242, %v30
    %vm247 = vmxor %vm227, %vm243
    %vm248 = vmxor %vm228, %vm244
    %vm249 = vmxor %vm229, %vm245
    %vm250 = vmxor %vm230, %vm246
    %251 = vset.pattern.permute.xlu0 11
    %252 = vperm.xlu0 %251, %v31
    %v253 = vpop.permute.xlu0 %252
    %254 = vset.pattern.permute.xlu0 11
    %255 = vperm.xlu0 %254, %v32
    %v256 = vpop.permute.xlu0 %255
    %257 = vset.pattern.permute.xlu0 11
    %258 = vperm.xlu0 %257, %v33
    %v259 = vpop.permute.xlu0 %258
    %260 = vset.pattern.permute.xlu0 11
    %261 = vperm.xlu0 %260, %v34
    %v262 = vpop.permute.xlu0 %261
    %vm263 = vcmp.eq.s32.totalorder %v253, %v30
    %vm264 = vcmp.eq.s32.totalorder %v256, %v30
    %vm265 = vcmp.eq.s32.totalorder %v259, %v30
    %vm266 = vcmp.eq.s32.totalorder %v262, %v30
    %vm267 = vmxor %vm247, %vm263
    %vm268 = vmxor %vm248, %vm264
    %vm269 = vmxor %vm249, %vm265
    %vm270 = vmxor %vm250, %vm266
    %v271 = vsel %vm267, 1, 0
    %v272 = vsel %vm268, 1, 0
    %v273 = vsel %vm269, 1, 0
    %v274 = vsel %vm270, 1, 0
    %v275 = vld [vmem:[#allocation2] sm:$0xff]
    %v276 = vunpack.c.0.s8 %v275
    %v277 = vunpack.c.1.s8 %v275
    %v278 = vunpack.c.2.s8 %v275
    %v279 = vunpack.c.3.s8 %v275
    %v280 = vxor.u32 %v276, %v271
    %v281 = vxor.u32 %v277, %v272
    %v282 = vxor.u32 %v278, %v273
    %v283 = vxor.u32 %v279, %v274
    %v284 = vpack.c.b16 %v281, %v280
    %v285 = vpack.c.b16 %v283, %v282
    %v286 = vpack.c.b8 %v285, %v284
    %287 = vst [vmem:[#allocation5] sm:$0xff] %v286
    // Predicated region
    $region14: #{tpu_custom_call.1} parent=1 // pred_check
      _
    $region15: #{tpu_custom_call.1} parent=1 // pred_check_branch
      %289 = sbr.rel (0) target = $region17
    $region16: #{tpu_custom_call.1} parent=1 // pred_region
      %291 = vsyncadd [#allocation4], 0
      %s293 = sshll.u32 [#allocation5], 4
      %s294 = int_to_ptr.vmem [resolvable:$true] %s293
      %s295 = sshll.u32 %s2, 4
      %s296 = int_to_ptr.hbm [resolvable:$true] %s295
      %298 = dma.vmem_to_hbm [thread:$0]  %s294, 128, %s296, [#allocation4]
    $region17: #{tpu_custom_call.1} parent=1 // pred_fallthru
      _
    // Predicated region
    $region18: #{tpu_custom_call.1} parent=1 // pred_check
      _
    $region19: #{tpu_custom_call.1} parent=1 // pred_check_branch
      %300 = sbr.rel (0) target = $region21
    $region20: #{tpu_custom_call.1} parent=1 // pred_region
      %302 = dma.done [#allocation4], 128
    $region21: #{tpu_custom_call.1} parent=1 // pred_fallthru
      _
    %303 = vsyncpa [#allocation3], 1
    %304 = vsyncpa [#allocation4], 1

</llo_original>
